<compile_context>
chip_gen: v6e
topology: v6e:2x2x1
jax: 0.10.0
libtpu: 0.0.40
codegen_flags: <defaults>
</compile_context>

<pallas_src>
import functools

import jax
import jax.numpy as jnp
import numpy as np
from jax.experimental import pallas as pl
from jax.experimental.pallas import tpu as pltpu

BN_EPS = 1e-5
_VMEM_LIMIT = 32 * 1024 * 1024      # within the scoped-VMEM budget of v5e/v6e/v7x
_TARGET_ROWS = 512                  # ~matmul M rows per grid step


def _round_up(x, m):
    return (x + m - 1) // m * m


# ------------------------------ Pallas kernels ------------------------------ #

def _mm_bias_act_kernel(x_ref, w_ref, b_ref, o_ref, *, relu):
    """(TM, Cin)bf16 @ (Cin, Cout)bf16 -> f32 acc, + bias, optional ReLU."""
    acc = jnp.dot(x_ref[...], w_ref[...], preferred_element_type=jnp.float32)
    y = acc + b_ref[...]
    if relu:
        y = jnp.maximum(y, 0.0)
    o_ref[...] = y


def _conv_tap_kernel(x_ref, w_ref, b_ref, o_ref, *, ntaps, l_out, relu):
    """Conv along the middle axis of the tile ('same' halo provided by wrapper).

    The shifted windows are sliced from one VMEM copy of the tile (no HBM
    im2col); each tap is an MXU matmul accumulated in f32.

    x_ref: (TR, l_out + ntaps - 1, Cin) f32
    w_ref: (ntaps, Cin, Cout) bf16  (BN scale pre-folded)
    b_ref: (1, Cout) f32
    o_ref: (TR * l_out, Cout) f32
    """
    tr = x_ref.shape[0]
    cin = x_ref.shape[2]
    cout = w_ref.shape[2]
    acc = jnp.zeros((tr * l_out, cout), jnp.float32)
    for k in range(ntaps):                              # static, unrolled (7)
        xk = x_ref[:, k:k + l_out, :].reshape(tr * l_out, cin)
        acc = acc + jnp.dot(xk.astype(jnp.bfloat16), w_ref[k],
                            preferred_element_type=jnp.float32)
    y = acc + b_ref[...]
    if relu:
        y = jnp.maximum(y, 0.0)
    o_ref[...] = y


# ------------------------------ kernel wrappers ----------------------------- #

def _matmul_affine(x2d, w2d, bias, relu):
    """Rows-tiled fused matmul + bias + optional ReLU.  x2d: (M, Cin)."""
    m, cin = x2d.shape
    cout = w2d.shape[1]
    tm = min(_TARGET_ROWS, _round_up(m, 8))
    m_pad = _round_up(m, tm)
    x2d = x2d.astype(jnp.bfloat16)
    if m_pad != m:
        x2d = jnp.pad(x2d, ((0, m_pad - m), (0, 0)))
    out = pl.pallas_call(
        functools.partial(_mm_bias_act_kernel, relu=relu),
        out_shape=jax.ShapeDtypeStruct((m_pad, cout), jnp.float32),
        grid=(m_pad // tm,),
        in_specs=[pl.BlockSpec((tm, cin), lambda i: (i, 0)),
                  pl.BlockSpec((cin, cout), lambda i: (0, 0)),
                  pl.BlockSpec((1, cout), lambda i: (0, 0))],
        out_specs=pl.BlockSpec((tm, cout), lambda i: (i, 0)),
        compiler_params=pltpu.CompilerParams(
            dimension_semantics=("parallel",),
            vmem_limit_bytes=_VMEM_LIMIT),
    )(x2d, w2d.astype(jnp.bfloat16), bias.reshape(1, cout).astype(jnp.float32))
    return out[:m]


def _conv_1d7(x_nhwc, w_oihw, bias, relu=True):
    """(1,7) or (7,1) conv, stride 1, 'same' padding, + bias + optional ReLU."""
    cout, cin, kh, kw = w_oihw.shape
    assert (kh, kw) in ((1, 7), (7, 1)), (kh, kw)
    along_h = (kh == 7)
    k = 7
    if along_h:
        x_nhwc = jnp.transpose(x_nhwc, (0, 2, 1, 3))     # conv axis -> position 2
    n, rdim, L, _ = x_nhwc.shape

    # (Cout, Cin, kh, kw) -> (K, Cin, Cout); tap order matches shifted windows.
    w = jnp.transpose(w_oihw.reshape(cout, cin, k), (2, 1, 0))

    l_out = _round_up(L, 8)                 # sublane-aligned output width
    l_in = l_out + k - 1
    pad_lo = (k - 1) // 2                   # 3
    xp = jnp.pad(x_nhwc, ((0, 0), (0, 0), (pad_lo, l_in - L - pad_lo), (0, 0)))
    rows = n * rdim
    xp = xp.reshape(rows, l_in, cin).astype(jnp.float32)

    tr = max(1, min(rows, _TARGET_ROWS // l_out))
    rows_pad = _round_up(rows, tr)
    if rows_pad != rows:
        xp = jnp.pad(xp, ((0, rows_pad - rows), (0, 0), (0, 0)))

    out = pl.pallas_call(
        functools.partial(_conv_tap_kernel, ntaps=k, l_out=l_out, relu=relu),
        out_shape=jax.ShapeDtypeStruct((rows_pad * l_out, cout), jnp.float32),
        grid=(rows_pad // tr,),
        in_specs=[pl.BlockSpec((tr, l_in, cin), lambda i: (i, 0, 0)),
                  pl.BlockSpec((k, cin, cout), lambda i: (0, 0, 0)),
                  pl.BlockSpec((1, cout), lambda i: (0, 0))],
        out_specs=pl.BlockSpec((tr * l_out, cout), lambda i: (i, 0)),
        compiler_params=pltpu.CompilerParams(
            dimension_semantics=("parallel",),
            vmem_limit_bytes=_VMEM_LIMIT),
    )(xp, w.astype(jnp.bfloat16), bias.reshape(1, cout).astype(jnp.float32))

    out = out.reshape(rows_pad, l_out, cout)[:rows, :L]
    out = out.reshape(n, rdim, L, cout)
    if along_h:
        out = jnp.transpose(out, (0, 2, 1, 3))
    return out


# ------------------------- parameters / module glue ------------------------- #

def _init_basic_conv(key, cin, cout, kh, kw):
    """Parameters of BasicConv2d: Conv2d(bias=True) + BatchNorm2d (eval stats)."""
    ks = jax.random.split(key, 6)
    return dict(
        w=jax.random.normal(ks[0], (cout, cin, kh, kw), jnp.float32) * 0.1,
        b=jax.random.normal(ks[1], (cout,), jnp.float32) * 0.1,
        gamma=1.0 + 0.1 * jax.random.normal(ks[2], (cout,), jnp.float32),
        beta=0.1 * jax.random.normal(ks[3], (cout,), jnp.float32),
        mean=0.1 * jax.random.normal(ks[4], (cout,), jnp.float32),
        var=jax.random.uniform(ks[5], (cout,), jnp.float32, minval=0.5, maxval=1.5),
    )


def _fold_bn(p):
    """Fold conv bias + eval-mode BatchNorm into (scaled weight, bias)."""
    inv = 1.0 / jnp.sqrt(p['var'] + BN_EPS)
    scale = p['gamma'] * inv
    w = p['w'] * scale[:, None, None, None]
    bias = (p['b'] - p['mean']) * scale + p['beta']
    return w, bias


def _fused_1x1(x_nhwc, plist):
    """Run several 1x1 BasicConv2d's sharing the same input as ONE matmul."""
    n, h, w, cin = x_nhwc.shape
    ws, bs, couts = [], [], []
    for p in plist:
        wf, bf = _fold_bn(p)
        ws.append(jnp.transpose(wf[:, :, 0, 0]))          # (Cin, Cout_i)
        bs.append(bf)
        couts.append(wf.shape[0])
    w2d = jnp.concatenate(ws, axis=1)
    bias = jnp.concatenate(bs, axis=0)
    y = _matmul_affine(x_nhwc.reshape(n * h * w, cin), w2d, bias, relu=True)
    y = y.reshape(n, h, w, sum(couts))
    outs, off = [], 0
    for c in couts:
        outs.append(y[..., off:off + c])
        off += c
    return outs


def _run_sep(x_nhwc, p):
    """BasicConv2d with a (1,7) or (7,1) kernel (BN folded, ReLU)."""
    wf, bf = _fold_bn(p)
    return _conv_1d7(x_nhwc, wf, bf, relu=True)


def _avgpool3x3_same(x):
    """AvgPool2d(3, stride=1, pad=1, count_include_pad=True) on NHWC (XLA glue)."""
    xp = jnp.pad(x, ((0, 0), (1, 1), (0, 0), (0, 0)))
    s = xp[:, :-2] + xp[:, 1:-1] + xp[:, 2:]
    sp = jnp.pad(s, ((0, 0), (0, 0), (1, 1), (0, 0)))
    s = sp[:, :, :-2] + sp[:, :, 1:-1] + sp[:, :, 2:]
    return s * (1.0 / 9.0)


def init_inception_b_params(key, in_ch, out1x1, out_nxn_reduce, out_nxn,
                            double_nxn_reduce, double_nxn, poolproj):
    ks = jax.random.split(key, 12)
    return {
        'b1': _init_basic_conv(ks[0], in_ch, out1x1, 1, 1),
        'b2_1': _init_basic_conv(ks[1], in_ch, out_nxn_reduce, 1, 1),
        'b2_2': _init_basic_conv(ks[2], out_nxn_reduce, out_nxn_reduce, 1, 7),
        'b2_3': _init_basic_conv(ks[3], out_nxn_reduce, out_nxn, 7, 1),
        'b3_1': _init_basic_conv(ks[4], in_ch, double_nxn_reduce, 1, 1),
        'b3_2': _init_basic_conv(ks[5], double_nxn_reduce, double_nxn_reduce, 1, 7),
        'b3_3': _init_basic_conv(ks[6], double_nxn_reduce, double_nxn_reduce, 7, 1),
        'b3_4': _init_basic_conv(ks[7], double_nxn_reduce, double_nxn_reduce, 1, 7),
        'b3_5': _init_basic_conv(ks[8], double_nxn_reduce, double_nxn, 7, 1),
        # branch4: AvgPool(3,1,1) then plain Conv2d 1x1 (bias, no BN, no ReLU)
        'b4_w': jax.random.normal(ks[9], (poolproj, in_ch, 1, 1), jnp.float32) * 0.1,
        'b4_b': jax.random.normal(ks[10], (poolproj,), jnp.float32) * 0.1,
    }


def inception_b_forward(x_nchw, params):
    """InceptionModuleB.forward.  Input/output are NCHW (PyTorch convention)."""
    x = jnp.transpose(x_nchw, (0, 2, 3, 1)).astype(jnp.float32)   # -> NHWC
    n, h, w, cin = x.shape

    # fused 1x1 convs over the shared input: branch1, branch2-reduce, branch3-reduce
    b1, b2, b3 = _fused_1x1(x, (params['b1'], params['b2_1'], params['b3_1']))

    # branch2: 1x1 -> 1x7 -> 7x1
    b2 = _run_sep(b2, params['b2_2'])
    b2 = _run_sep(b2, params['b2_3'])

    # branch3: 1x1 -> (1x7 -> 7x1) x 2
    # TODO(synk): fuse each 1x7->7x1 pair into one kernel keeping the
    # intermediate activation in VMEM scratch (halves its HBM traffic again).
    for name in ('b3_2', 'b3_3', 'b3_4', 'b3_5'):
        b3 = _run_sep(b3, params[name])

    # branch4: separable 3x3 average (shifted adds) + single 1x1 projection.
    pooled = _avgpool3x3_same(x)
    poolproj = params['b4_w'].shape[0]
    w4 = jnp.transpose(params['b4_w'][:, :, 0, 0])                # (Cin, poolproj)
    b4 = _matmul_affine(pooled.reshape(n * h * w, cin), w4, params['b4_b'],
                        relu=False).reshape(n, h, w, poolproj)

    out = jnp.concatenate([b1, b2, b3, b4], axis=-1)              # channel concat
    return jnp.transpose(out, (0, 3, 1, 2))                       # -> NCHW


# ------------------------------ pure-JAX ref --------------------------------- #

def _ref_basic(x_nhwc, p, relu=True):
    w = jnp.transpose(p['w'], (2, 3, 1, 0))                       # HWIO
    kh, kw = w.shape[0], w.shape[1]
    ph, pw = (kh - 1) // 2, (kw - 1) // 2
    y = jax.lax.conv_general_dilated(
        x_nhwc, w, (1, 1), ((ph, ph), (pw, pw)),
        dimension_numbers=('NHWC', 'HWIO', 'NHWC'),
        precision=jax.lax.Precision.HIGHEST) + p['b']
    y = (y - p['mean']) / jnp.sqrt(p['var'] + BN_EPS) * p['gamma'] + p['beta']
    if relu:
        y = jnp.maximum(y, 0.0)
    return y


def _ref_forward(x_nchw, params):
    x = jnp.transpose(x_nchw, (0, 2, 3, 1)).astype(jnp.float32)
    b1 = _ref_basic(x, params['b1'])
    b2 = _ref_basic(_ref_basic(_ref_basic(x, params['b2_1']), params['b2_2']),
                    params['b2_3'])
    b3 = x
    for name in ('b3_1', 'b3_2', 'b3_3', 'b3_4', 'b3_5'):
        b3 = _ref_basic(b3, params[name])
    pooled = jax.lax.reduce_window(
        x, 0.0, jax.lax.add, (1, 3, 3, 1), (1, 1, 1, 1),
        ((0, 0), (1, 1), (1, 1), (0, 0))) / 9.0
    w4 = jnp.transpose(params['b4_w'], (2, 3, 1, 0))
    b4 = jax.lax.conv_general_dilated(
        pooled, w4, (1, 1), ((0, 0), (0, 0)),
        dimension_numbers=('NHWC', 'HWIO', 'NHWC'),
        precision=jax.lax.Precision.HIGHEST) + params['b4_b']
    out = jnp.concatenate([b1, b2, b3, b4], axis=-1)
    return jnp.transpose(out, (0, 3, 1, 2))


# ---------------------------------- main ------------------------------------- #

if __name__ == "__main__":
    key = jax.random.PRNGKey(0)
    k_x, k_p = jax.random.split(key)

    # Small InceptionModuleB config
    in_ch, out1x1 = 32, 32
    out_nxn_reduce, out_nxn = 32, 32
    double_nxn_reduce, double_nxn = 32, 32
    poolproj = 32

    N, H, W = 2, 12, 12
    x = jax.random.normal(k_x, (N, in_ch, H, W), jnp.float32)     # NCHW input

    params = init_inception_b_params(k_p, in_ch, out1x1, out_nxn_reduce, out_nxn,
                                     double_nxn_reduce, double_nxn, poolproj)

    out = inception_b_forward(x, params)
    out = jax.block_until_ready(out)

    expected_c = out1x1 + out_nxn + double_nxn + poolproj
    assert out.shape == (N, expected_c, H, W), out.shape

    # sanity check against a pure-JAX (XLA, f32 HIGHEST) reference of the same math
    ref = jax.block_until_ready(_ref_forward(x, params))
    np.testing.assert_allclose(np.asarray(out), np.asarray(ref),
                               rtol=5e-2, atol=5e-2)

    print("KERNEL_OK")
</pallas_src>

<mosaic_0001>
module attributes {stable_mosaic.version = 11 : i64} {
  func.func @_mm_bias_act_kernel(%arg0: i32, %arg1: memref<288x32xbf16, #tpu.memory_space<vmem>>, %arg2: memref<32x96xbf16, #tpu.memory_space<vmem>>, %arg3: memref<1x96xf32, #tpu.memory_space<vmem>>, %arg4: memref<288x96xf32, #tpu.memory_space<vmem>>) attributes {dimension_semantics = [#tpu.dimension_semantics<parallel>], iteration_bounds = array<i64: 1>, scalar_prefetch = 0 : i64, scratch_operands = 0 : i64, tpu.core_type = #tpu.core_type<tc>, window_params = [{transform_indices = @transform_0, window_bounds = array<i64: 288, 32>}, {pipeline_mode = #tpu.pipeline_mode<synchronous>, transform_indices = @transform_1, window_bounds = array<i64: 32, 96>}, {pipeline_mode = #tpu.pipeline_mode<synchronous>, transform_indices = @transform_2, window_bounds = array<i64: 1, 96>}, {transform_indices = @transform_3, window_bounds = array<i64: 288, 96>}]} {
    %c0 = arith.constant 0 : index
    %c0_0 = arith.constant 0 : index
    %0 = vector.load %arg1[%c0, %c0_0] : memref<288x32xbf16, #tpu.memory_space<vmem>>, vector<288x32xbf16>
    %c0_1 = arith.constant 0 : index
    %c0_2 = arith.constant 0 : index
    %1 = vector.load %arg2[%c0_1, %c0_2] : memref<32x96xbf16, #tpu.memory_space<vmem>>, vector<32x96xbf16>
    %cst = arith.constant dense<0.000000e+00> : vector<288x96xf32>
    %2 = tpu.matmul %0, %1, %cst {dimension_numbers = #tpu.dot_dimension_numbers<[1], [0], [0], [1], [0, 0, 1, 1], [], []>} : vector<288x32xbf16>, vector<32x96xbf16>, vector<288x96xf32> -> vector<288x96xf32>
    %c0_3 = arith.constant 0 : index
    %c0_4 = arith.constant 0 : index
    %3 = vector.load %arg3[%c0_3, %c0_4] : memref<1x96xf32, #tpu.memory_space<vmem>>, vector<1x96xf32>
    %4 = vector.broadcast %3 : vector<1x96xf32> to vector<288x96xf32>
    %5 = arith.addf %2, %4 : vector<288x96xf32>
    %cst_5 = arith.constant 0.000000e+00 : f32
    %6 = vector.broadcast %cst_5 : f32 to vector<288x96xf32>
    %7 = arith.maximumf %5, %6 : vector<288x96xf32>
    %c0_6 = arith.constant 0 : index
    %c0_7 = arith.constant 0 : index
    %8 = vector.load %arg4[%c0_6, %c0_7] : memref<288x96xf32, #tpu.memory_space<vmem>>, vector<288x96xf32>
    tpu.vector_store %arg4[%c0_6, %c0_7], %7 {strides = array<i32>} : memref<288x96xf32, #tpu.memory_space<vmem>>, vector<288x96xf32>,
    return
  }
  func.func @transform_0(%arg0: i32) -> (i32, i32) {
    %c0_i32 = arith.constant 0 : i32
    %c0_i32_0 = arith.constant 0 : i32
    return %arg0, %c0_i32 : i32, i32
  }
  func.func @transform_1(%arg0: i32) -> (i32, i32) {
    %c0_i32 = arith.constant 0 : i32
    %c0_i32_0 = arith.constant 0 : i32
    %c0_i32_1 = arith.constant 0 : i32
    return %c0_i32, %c0_i32_0 : i32, i32
  }
  func.func @transform_2(%arg0: i32) -> (i32, i32) {
    %c0_i32 = arith.constant 0 : i32
    %c0_i32_0 = arith.constant 0 : i32
    %c0_i32_1 = arith.constant 0 : i32
    return %c0_i32, %c0_i32_0 : i32, i32
  }
  func.func @transform_3(%arg0: i32) -> (i32, i32) {
    %c0_i32 = arith.constant 0 : i32
    %c0_i32_0 = arith.constant 0 : i32
    return %arg0, %c0_i32 : i32, i32
  }
}

</mosaic_0001>

<llo_original>
// kernel: tpu_custom_call.1
$region0: #{tpu_custom_call.1}
  #allocation0 [shape = 'u32[]', space=smem, size = 0x4, offset = 0x4, fixed_abs, tag = 'smem constant byte address 0x4 - core index']
  #allocation1 [shape = 'u32[144,128]{1,0:T(1,128)}', space=vmem, size = 0x12000, scoped, tag = 'internal scratch']
  %s0 = inlined_call_operand.vmem [shape: bf16[288,32], index: 0, kind: input, shape index: {}]
  %s1 = inlined_call_operand.vmem [shape: bf16[32,96], index: 1, kind: input, shape index: {}]
  %s2 = inlined_call_operand.vmem [shape: f32[1,96], index: 2, kind: input, shape index: {}]
  %s3 = inlined_call_operand.hbm [shape: f32[288,96], index: 3, kind: output, shape index: {}]
  %s4 = sld [smem:[#allocation0]]
  $region22: #{tpu_custom_call.1} parent=0
    _
  %s6 = ssub.s32 1, %s4
  %s7 = scalar_select 0, %s6, %s4
  $region1: #{tpu_custom_call.1} parent=0
    #allocation2 [shape = 'u8[147456]{0}', space=vmem, size = 0x24000, scoped, tag = 'output window, operand 0, single buffered']
    #allocation3 [shape = 's32[1]{0}', space=sflag, size = 0x4, scoped, tag = 'scoped memory for tpu_custom_call.1']
    %8 = vsyncpa [#allocation3], 0
    // Predicated region
    $region2: #{tpu_custom_call.1} parent=1 // pred_check
      _
    $region3: #{tpu_custom_call.1} parent=1 // pred_check_branch
      %10 = sbr.rel (0) target = $region5
    $region4: #{tpu_custom_call.1} parent=1 // pred_region
      _
    $region5: #{tpu_custom_call.1} parent=1 // pred_fallthru
      _
    // Predicated region
    $region6: #{tpu_custom_call.1} parent=1 // pred_check
      _
    $region7: #{tpu_custom_call.1} parent=1 // pred_check_branch
      %12 = sbr.rel (0) target = $region9
    $region8: #{tpu_custom_call.1} parent=1 // pred_region
      _
    $region9: #{tpu_custom_call.1} parent=1 // pred_fallthru
      _
    // Predicated region
    $region10: #{tpu_custom_call.1} parent=1 // pred_check
      _
    $region11: #{tpu_custom_call.1} parent=1 // pred_check_branch
      %14 = sbr.rel (0) target = $region13
    $region12: #{tpu_custom_call.1} parent=1 // pred_region
      _
    $region13: #{tpu_custom_call.1} parent=1 // pred_fallthru
      _
    %v16 = vld [vmem:[%s0] sm:$0xf]
    %v17 = vld [vmem:[%s0 + $0x4] sm:$0xf]
    %v18 = vld [vmem:[%s0 + $0x8] sm:$0xf]
    %v19 = vld [vmem:[%s0 + $0xc] sm:$0xf]
    %v20 = vld [vmem:[%s0 + $0x10] sm:$0xf]
    %v21 = vld [vmem:[%s0 + $0x14] sm:$0xf]
    %v22 = vld [vmem:[%s0 + $0x18] sm:$0xf]
    %v23 = vld [vmem:[%s0 + $0x1c] sm:$0xf]
    %v24 = vld [vmem:[%s0 + $0x20] sm:$0xf]
    %v25 = vld [vmem:[%s0 + $0x24] sm:$0xf]
    %v26 = vld [vmem:[%s0 + $0x28] sm:$0xf]
    %v27 = vld [vmem:[%s0 + $0x2c] sm:$0xf]
    %v28 = vld [vmem:[%s0 + $0x30] sm:$0xf]
    %v29 = vld [vmem:[%s0 + $0x34] sm:$0xf]
    %v30 = vld [vmem:[%s0 + $0x38] sm:$0xf]
    %v31 = vld [vmem:[%s0 + $0x3c] sm:$0xf]
    %v32 = vld [vmem:[%s0 + $0x40] sm:$0xf]
    %v33 = vld [vmem:[%s0 + $0x44] sm:$0xf]
    %v34 = vld [vmem:[%s0 + $0x48] sm:$0xf]
    %v35 = vld [vmem:[%s0 + $0x4c] sm:$0xf]
    %v36 = vld [vmem:[%s0 + $0x50] sm:$0xf]
    %v37 = vld [vmem:[%s0 + $0x54] sm:$0xf]
    %v38 = vld [vmem:[%s0 + $0x58] sm:$0xf]
    %v39 = vld [vmem:[%s0 + $0x5c] sm:$0xf]
    %v40 = vld [vmem:[%s0 + $0x60] sm:$0xf]
    %v41 = vld [vmem:[%s0 + $0x64] sm:$0xf]
    %v42 = vld [vmem:[%s0 + $0x68] sm:$0xf]
    %v43 = vld [vmem:[%s0 + $0x6c] sm:$0xf]
    %v44 = vld [vmem:[%s0 + $0x70] sm:$0xf]
    %v45 = vld [vmem:[%s0 + $0x74] sm:$0xf]
    %v46 = vld [vmem:[%s0 + $0x78] sm:$0xf]
    %v47 = vld [vmem:[%s0 + $0x7c] sm:$0xf]
    %v48 = vld [vmem:[%s0 + $0x80] sm:$0xf]
    %v49 = vld [vmem:[%s0 + $0x84] sm:$0xf]
    %v50 = vld [vmem:[%s0 + $0x88] sm:$0xf]
    %v51 = vld [vmem:[%s0 + $0x8c] sm:$0xf]
    %v52 = vld [vmem:[%s1] sm:$0xf]
    %v53 = vld [vmem:[%s1 + $0x4] sm:$0xf]
    %v54 = vld [vmem:[%s1 + $0x8] sm:$0xf]
    %v55 = vld [vmem:[%s1 + $0xc] sm:$0xf]
    %v56 = vld [vmem:[%s2] sm:$0x1]
    %v58 = vlaneseq
    %v59 = vshrl.u32 %v58, 7
    %v60 = vsub.s32 0, %v59
    %v61 = vrot.slane %v56, %v60
    %v99 = vunpack.c.l.b16 %v16
    %v100 = vunpack.c.l.b16 %v17
    %v101 = vunpack.c.l.b16 %v18
    %v102 = vunpack.c.l.b16 %v19
    %v103 = vunpack.c.l.b16 %v20
    %v104 = vunpack.c.l.b16 %v21
    %v105 = vunpack.c.l.b16 %v22
    %v106 = vunpack.c.l.b16 %v23
    %v107 = vunpack.c.l.b16 %v24
    %v108 = vunpack.c.l.b16 %v25
    %v109 = vunpack.c.l.b16 %v26
    %v110 = vunpack.c.l.b16 %v27
    %v111 = vunpack.c.l.b16 %v28
    %v112 = vunpack.c.l.b16 %v29
    %v113 = vunpack.c.l.b16 %v30
    %v114 = vunpack.c.l.b16 %v31
    %v115 = vunpack.c.l.b16 %v32
    %v116 = vunpack.c.l.b16 %v33
    %v117 = vunpack.c.l.b16 %v34
    %v118 = vunpack.c.l.b16 %v35
    %v119 = vunpack.c.l.b16 %v36
    %v120 = vunpack.c.l.b16 %v37
    %v121 = vunpack.c.l.b16 %v38
    %v122 = vunpack.c.l.b16 %v39
    %v123 = vunpack.c.l.b16 %v40
    %v124 = vunpack.c.l.b16 %v41
    %v125 = vunpack.c.l.b16 %v42
    %v126 = vunpack.c.l.b16 %v43
    %v127 = vunpack.c.l.b16 %v44
    %v128 = vunpack.c.l.b16 %v45
    %v129 = vunpack.c.l.b16 %v46
    %v130 = vunpack.c.l.b16 %v47
    %v131 = vunpack.c.l.b16 %v48
    %v132 = vunpack.c.l.b16 %v49
    %v133 = vunpack.c.l.b16 %v50
    %v134 = vunpack.c.l.b16 %v51
    %v135 = vpack.c.b16 %v100, %v99
    %v136 = vpack.c.b16 %v102, %v101
    %v137 = vpack.c.b16 %v104, %v103
    %v138 = vpack.c.b16 %v106, %v105
    %v139 = vpack.c.b16 %v108, %v107
    %v140 = vpack.c.b16 %v110, %v109
    %v141 = vpack.c.b16 %v112, %v111
    %v142 = vpack.c.b16 %v114, %v113
    %v143 = vpack.c.b16 %v116, %v115
    %v144 = vpack.c.b16 %v118, %v117
    %v145 = vpack.c.b16 %v120, %v119
    %v146 = vpack.c.b16 %v122, %v121
    %v147 = vpack.c.b16 %v124, %v123
    %v148 = vpack.c.b16 %v126, %v125
    %v149 = vpack.c.b16 %v128, %v127
    %v150 = vpack.c.b16 %v130, %v129
    %v151 = vpack.c.b16 %v132, %v131
    %v152 = vpack.c.b16 %v134, %v133
    %v157 = vunpack.c.l.b16 %v52
    %v158 = vunpack.c.l.b16 %v53
    %v159 = vunpack.c.l.b16 %v54
    %v160 = vunpack.c.l.b16 %v55
    %v161 = vpack.c.b16 %v158, %v157
    %v162 = vpack.c.b16 %v160, %v159
    %vm165 = vcmask 261120
    %v167 = vsel %vm165, %v135, 0
    %v170 = vsel %vm165, %v136, 0
    %v173 = vsel %vm165, %v137, 0
    %v176 = vsel %vm165, %v138, 0
    %v179 = vsel %vm165, %v139, 0
    %v182 = vsel %vm165, %v140, 0
    %v185 = vsel %vm165, %v141, 0
    %v188 = vsel %vm165, %v142, 0
    %v191 = vsel %vm165, %v143, 0
    %v194 = vsel %vm165, %v144, 0
    %v197 = vsel %vm165, %v145, 0
    %v200 = vsel %vm165, %v146, 0
    %v203 = vsel %vm165, %v147, 0
    %v206 = vsel %vm165, %v148, 0
    %v209 = vsel %vm165, %v149, 0
    %v212 = vsel %vm165, %v150, 0
    %v215 = vsel %vm165, %v151, 0
    %v218 = vsel %vm165, %v152, 0
    %220 = vmatprep.subr.bf16.mxu0 0
    %221 = vmatpush1.bf16.msra.mxu0 0
    %222 = vmatprep.subr.bf16.mxu0 0
    %223 = vmatpush1.bf16.msra.mxu0 0
    %224 = vmatprep.subr.bf16.mxu0 0
    %225 = vmatpush1.bf16.msra.mxu0 0
    %226 = vmatprep.subr.bf16.mxu0 0
    %227 = vmatpush1.bf16.msra.mxu0 0
    %228 = vmatprep.subr.bf16.mxu0 0
    %229 = vmatpush1.bf16.msra.mxu0 0
    %230 = vmatprep.subr.bf16.mxu0 0
    %231 = vmatpush1.bf16.msra.mxu0 0
    %232 = vmatprep.subr.bf16.mxu0 0
    %233 = vmatpush1.bf16.msra.mxu0 %v162
    %234 = vmatprep.subr.bf16.mxu0 0
    %235 = vmatpush1.bf16.msra.mxu0 %v161
    %236 = vmatprep.subr.bf16.mxu0 0
    %237 = vmatpush2.bf16.msra.mxu0 0
    %238 = vmatprep.subr.bf16.mxu0 0
    %239 = vmatpush2.bf16.msra.mxu0 0
    %240 = vmatprep.subr.bf16.mxu0 0
    %241 = vmatpush2.bf16.msra.mxu0 0
    %242 = vmatprep.subr.bf16.mxu0 0
    %243 = vmatpush2.bf16.msra.mxu0 0
    %244 = vmatprep.subr.bf16.mxu0 0
    %245 = vmatpush2.bf16.msra.mxu0 0
    %246 = vmatprep.subr.bf16.mxu0 0
    %247 = vmatpush2.bf16.msra.mxu0 0
    %248 = vmatprep.subr.bf16.mxu0 0
    %249 = vmatpush2.bf16.msra.mxu0 0
    %250 = vmatprep.subr.bf16.mxu0 0
    %251 = vmatpush2.bf16.msra.mxu0 0
    %252 = vmatprep.mubr.bf16.mxu0 0
    %253 = vmatmul.mubr.bf16.gmra.mxu0 %v167
    %v254 = vpop.f32.mrf.mxu0
    %v255 = vadd.f32 %v61, %v254
    %v256 = vpop.f32.mrf.mxu0
    %v257 = vpop.f32.mrf.mxu0
    %v258 = vadd.f32 %v61, %v257
    %v259 = vpop.f32.mrf.mxu0
    %260 = vmatprep.mubr.bf16.mxu0 0
    %261 = vmatmul.mubr.bf16.gmra.mxu0 %v170
    %v262 = vpop.f32.mrf.mxu0
    %v263 = vadd.f32 %v61, %v262
    %v264 = vpop.f32.mrf.mxu0
    %v265 = vpop.f32.mrf.mxu0
    %v266 = vadd.f32 %v61, %v265
    %v267 = vpop.f32.mrf.mxu0
    %268 = vmatprep.mubr.bf16.mxu0 0
    %269 = vmatmul.mubr.bf16.gmra.mxu0 %v173
    %v270 = vpop.f32.mrf.mxu0
    %v271 = vadd.f32 %v61, %v270
    %v272 = vpop.f32.mrf.mxu0
    %v273 = vpop.f32.mrf.mxu0
    %v274 = vadd.f32 %v61, %v273
    %v275 = vpop.f32.mrf.mxu0
    %276 = vmatprep.mubr.bf16.mxu0 0
    %277 = vmatmul.mubr.bf16.gmra.mxu0 %v176
    %v278 = vpop.f32.mrf.mxu0
    %v279 = vadd.f32 %v61, %v278
    %v280 = vpop.f32.mrf.mxu0
    %v281 = vpop.f32.mrf.mxu0
    %v282 = vadd.f32 %v61, %v281
    %v283 = vpop.f32.mrf.mxu0
    %284 = vmatprep.mubr.bf16.mxu0 0
    %285 = vmatmul.mubr.bf16.gmra.mxu0 %v179
    %v286 = vpop.f32.mrf.mxu0
    %v287 = vadd.f32 %v61, %v286
    %v288 = vpop.f32.mrf.mxu0
    %v289 = vpop.f32.mrf.mxu0
    %v290 = vadd.f32 %v61, %v289
    %v291 = vpop.f32.mrf.mxu0
    %292 = vmatprep.mubr.bf16.mxu0 0
    %293 = vmatmul.mubr.bf16.gmra.mxu0 %v182
    %v294 = vpop.f32.mrf.mxu0
    %v295 = vadd.f32 %v61, %v294
    %v296 = vpop.f32.mrf.mxu0
    %v297 = vpop.f32.mrf.mxu0
    %v298 = vadd.f32 %v61, %v297
    %v299 = vpop.f32.mrf.mxu0
    %300 = vmatprep.mubr.bf16.mxu0 0
    %301 = vmatmul.mubr.bf16.gmra.mxu0 %v185
    %v302 = vpop.f32.mrf.mxu0
    %v303 = vadd.f32 %v61, %v302
    %v304 = vpop.f32.mrf.mxu0
    %v305 = vpop.f32.mrf.mxu0
    %v306 = vadd.f32 %v61, %v305
    %v307 = vpop.f32.mrf.mxu0
    %308 = vmatprep.mubr.bf16.mxu0 0
    %309 = vmatmul.mubr.bf16.gmra.mxu0 %v188
    %v310 = vpop.f32.mrf.mxu0
    %v311 = vadd.f32 %v61, %v310
    %v312 = vpop.f32.mrf.mxu0
    %v313 = vpop.f32.mrf.mxu0
    %v314 = vadd.f32 %v61, %v313
    %v315 = vpop.f32.mrf.mxu0
    %316 = vmatprep.mubr.bf16.mxu0 0
    %317 = vmatmul.mubr.bf16.gmra.mxu0 %v191
    %v318 = vpop.f32.mrf.mxu0
    %v319 = vadd.f32 %v61, %v318
    %v320 = vpop.f32.mrf.mxu0
    %v321 = vpop.f32.mrf.mxu0
    %v322 = vadd.f32 %v61, %v321
    %v323 = vpop.f32.mrf.mxu0
    %324 = vmatprep.mubr.bf16.mxu0 0
    %325 = vmatmul.mubr.bf16.gmra.mxu0 %v194
    %v326 = vpop.f32.mrf.mxu0
    %v327 = vadd.f32 %v61, %v326
    %v328 = vpop.f32.mrf.mxu0
    %v329 = vpop.f32.mrf.mxu0
    %v330 = vadd.f32 %v61, %v329
    %v331 = vpop.f32.mrf.mxu0
    %332 = vmatprep.mubr.bf16.mxu0 0
    %333 = vmatmul.mubr.bf16.gmra.mxu0 %v197
    %v334 = vpop.f32.mrf.mxu0
    %v335 = vadd.f32 %v61, %v334
    %v336 = vpop.f32.mrf.mxu0
    %v337 = vpop.f32.mrf.mxu0
    %v338 = vadd.f32 %v61, %v337
    %v339 = vpop.f32.mrf.mxu0
    %340 = vmatprep.mubr.bf16.mxu0 0
    %341 = vmatmul.mubr.bf16.gmra.mxu0 %v200
    %v342 = vpop.f32.mrf.mxu0
    %v343 = vadd.f32 %v61, %v342
    %v344 = vpop.f32.mrf.mxu0
    %v345 = vpop.f32.mrf.mxu0
    %v346 = vadd.f32 %v61, %v345
    %v347 = vpop.f32.mrf.mxu0
    %348 = vmatprep.mubr.bf16.mxu0 0
    %349 = vmatmul.mubr.bf16.gmra.mxu0 %v203
    %v350 = vpop.f32.mrf.mxu0
    %v351 = vadd.f32 %v61, %v350
    %v352 = vpop.f32.mrf.mxu0
    %v353 = vpop.f32.mrf.mxu0
    %v354 = vadd.f32 %v61, %v353
    %v355 = vpop.f32.mrf.mxu0
    %356 = vmatprep.mubr.bf16.mxu0 0
    %357 = vmatmul.mubr.bf16.gmra.mxu0 %v206
    %v358 = vpop.f32.mrf.mxu0
    %v359 = vadd.f32 %v61, %v358
    %v360 = vpop.f32.mrf.mxu0
    %v361 = vpop.f32.mrf.mxu0
    %v362 = vadd.f32 %v61, %v361
    %v363 = vpop.f32.mrf.mxu0
    %364 = vmatprep.mubr.bf16.mxu0 0
    %365 = vmatmul.mubr.bf16.gmra.mxu0 %v209
    %v366 = vpop.f32.mrf.mxu0
    %v367 = vadd.f32 %v61, %v366
    %v368 = vpop.f32.mrf.mxu0
    %v369 = vpop.f32.mrf.mxu0
    %v370 = vadd.f32 %v61, %v369
    %v371 = vpop.f32.mrf.mxu0
    %372 = vmatprep.mubr.bf16.mxu0 0
    %373 = vmatmul.mubr.bf16.gmra.mxu0 %v212
    %v374 = vpop.f32.mrf.mxu0
    %v375 = vadd.f32 %v61, %v374
    %v376 = vpop.f32.mrf.mxu0
    %v377 = vpop.f32.mrf.mxu0
    %v378 = vadd.f32 %v61, %v377
    %v379 = vpop.f32.mrf.mxu0
    %380 = vmatprep.mubr.bf16.mxu0 0
    %381 = vmatmul.mubr.bf16.gmra.mxu0 %v215
    %v382 = vpop.f32.mrf.mxu0
    %v383 = vadd.f32 %v61, %v382
    %v384 = vpop.f32.mrf.mxu0
    %v385 = vpop.f32.mrf.mxu0
    %v386 = vadd.f32 %v61, %v385
    %v387 = vpop.f32.mrf.mxu0
    %388 = vmatprep.mubr.bf16.mxu0 0
    %389 = vmatmul.mubr.bf16.gmra.mxu0 %v218
    %v390 = vpop.f32.mrf.mxu0
    %v391 = vadd.f32 %v61, %v390
    %v392 = vpop.f32.mrf.mxu0
    %v393 = vpop.f32.mrf.mxu0
    %v394 = vadd.f32 %v61, %v393
    %v395 = vpop.f32.mrf.mxu0
    %396 = vdwg.mxu0
    %v397 = vmax.f32 %v255, 0.0
    %v398 = vmax.f32 %v258, 0.0
    %v399 = vmax.f32 %v263, 0.0
    %v400 = vmax.f32 %v266, 0.0
    %v401 = vmax.f32 %v271, 0.0
    %v402 = vmax.f32 %v274, 0.0
    %v403 = vmax.f32 %v279, 0.0
    %v404 = vmax.f32 %v282, 0.0
    %v405 = vmax.f32 %v287, 0.0
    %v406 = vmax.f32 %v290, 0.0
    %v407 = vmax.f32 %v295, 0.0
    %v408 = vmax.f32 %v298, 0.0
    %v409 = vmax.f32 %v303, 0.0
    %v410 = vmax.f32 %v306, 0.0
    %v411 = vmax.f32 %v311, 0.0
    %v412 = vmax.f32 %v314, 0.0
    %v413 = vmax.f32 %v319, 0.0
    %v414 = vmax.f32 %v322, 0.0
    %v415 = vmax.f32 %v327, 0.0
    %v416 = vmax.f32 %v330, 0.0
    %v417 = vmax.f32 %v335, 0.0
    %v418 = vmax.f32 %v338, 0.0
    %v419 = vmax.f32 %v343, 0.0
    %v420 = vmax.f32 %v346, 0.0
    %v421 = vmax.f32 %v351, 0.0
    %v422 = vmax.f32 %v354, 0.0
    %v423 = vmax.f32 %v359, 0.0
    %v424 = vmax.f32 %v362, 0.0
    %v425 = vmax.f32 %v367, 0.0
    %v426 = vmax.f32 %v370, 0.0
    %v427 = vmax.f32 %v375, 0.0
    %v428 = vmax.f32 %v378, 0.0
    %v429 = vmax.f32 %v383, 0.0
    %v430 = vmax.f32 %v386, 0.0
    %v431 = vmax.f32 %v391, 0.0
    %v432 = vmax.f32 %v394, 0.0
    %vm433 = vcmask 785408
    %434 = vst.msk [vmem:[#allocation2] sm:$0xff] %vm433, %v397
    %435 = vst.msk [vmem:[#allocation2 + $0x8] sm:$0xff] %vm433, %v398
    %436 = vst.msk [vmem:[#allocation2 + $0x10] sm:$0xff] %vm433, %v399
    %437 = vst.msk [vmem:[#allocation2 + $0x18] sm:$0xff] %vm433, %v400
    %438 = vst.msk [vmem:[#allocation2 + $0x20] sm:$0xff] %vm433, %v401
    %439 = vst.msk [vmem:[#allocation2 + $0x28] sm:$0xff] %vm433, %v402
    %440 = vst.msk [vmem:[#allocation2 + $0x30] sm:$0xff] %vm433, %v403
    %441 = vst.msk [vmem:[#allocation2 + $0x38] sm:$0xff] %vm433, %v404
    %442 = vst.msk [vmem:[#allocation2 + $0x40] sm:$0xff] %vm433, %v405
    %443 = vst.msk [vmem:[#allocation2 + $0x48] sm:$0xff] %vm433, %v406
    %444 = vst.msk [vmem:[#allocation2 + $0x50] sm:$0xff] %vm433, %v407
    %445 = vst.msk [vmem:[#allocation2 + $0x58] sm:$0xff] %vm433, %v408
    %446 = vst.msk [vmem:[#allocation2 + $0x60] sm:$0xff] %vm433, %v409
    %447 = vst.msk [vmem:[#allocation2 + $0x68] sm:$0xff] %vm433, %v410
    %448 = vst.msk [vmem:[#allocation2 + $0x70] sm:$0xff] %vm433, %v411
    %449 = vst.msk [vmem:[#allocation2 + $0x78] sm:$0xff] %vm433, %v412
    %450 = vst.msk [vmem:[#allocation2 + $0x80] sm:$0xff] %vm433, %v413
    %451 = vst.msk [vmem:[#allocation2 + $0x88] sm:$0xff] %vm433, %v414
    %452 = vst.msk [vmem:[#allocation2 + $0x90] sm:$0xff] %vm433, %v415
    %453 = vst.msk [vmem:[#allocation2 + $0x98] sm:$0xff] %vm433, %v416
    %454 = vst.msk [vmem:[#allocation2 + $0xa0] sm:$0xff] %vm433, %v417
    %455 = vst.msk [vmem:[#allocation2 + $0xa8] sm:$0xff] %vm433, %v418
    %456 = vst.msk [vmem:[#allocation2 + $0xb0] sm:$0xff] %vm433, %v419
    %457 = vst.msk [vmem:[#allocation2 + $0xb8] sm:$0xff] %vm433, %v420
    %458 = vst.msk [vmem:[#allocation2 + $0xc0] sm:$0xff] %vm433, %v421
    %459 = vst.msk [vmem:[#allocation2 + $0xc8] sm:$0xff] %vm433, %v422
    %460 = vst.msk [vmem:[#allocation2 + $0xd0] sm:$0xff] %vm433, %v423
    %461 = vst.msk [vmem:[#allocation2 + $0xd8] sm:$0xff] %vm433, %v424
    %462 = vst.msk [vmem:[#allocation2 + $0xe0] sm:$0xff] %vm433, %v425
    %463 = vst.msk [vmem:[#allocation2 + $0xe8] sm:$0xff] %vm433, %v426
    %464 = vst.msk [vmem:[#allocation2 + $0xf0] sm:$0xff] %vm433, %v427
    %465 = vst.msk [vmem:[#allocation2 + $0xf8] sm:$0xff] %vm433, %v428
    %466 = vst.msk [vmem:[#allocation2 + $0x100] sm:$0xff] %vm433, %v429
    %467 = vst.msk [vmem:[#allocation2 + $0x108] sm:$0xff] %vm433, %v430
    %468 = vst.msk [vmem:[#allocation2 + $0x110] sm:$0xff] %vm433, %v431
    %469 = vst.msk [vmem:[#allocation2 + $0x118] sm:$0xff] %vm433, %v432
    // Predicated region
    $region14: #{tpu_custom_call.1} parent=1 // pred_check
      _
    $region15: #{tpu_custom_call.1} parent=1 // pred_check_branch
      %471 = sbr.rel (0) target = $region17
    $region16: #{tpu_custom_call.1} parent=1 // pred_region
      %s473 = ssub.s32 4608, 4608
      %474 = vsyncadd [#allocation3], %s473
      %s475 = sshll.u32 [#allocation2], 4
      %s476 = int_to_ptr.vmem [resolvable:$true] %s475
      %481 = dma.vmem_to_hbm [thread:$0]  %s476, 4608, %s3, [#allocation3], 128, 128, 8
    $region17: #{tpu_custom_call.1} parent=1 // pred_fallthru
      _
    // Predicated region
    $region18: #{tpu_custom_call.1} parent=1 // pred_check
      _
    $region19: #{tpu_custom_call.1} parent=1 // pred_check_branch
      %483 = sbr.rel (0) target = $region21
    $region20: #{tpu_custom_call.1} parent=1 // pred_region
      %484 = dma.done [#allocation3], 4608
    $region21: #{tpu_custom_call.1} parent=1 // pred_fallthru
      _
    %485 = vsyncpa [#allocation3], 1

</llo_original>
